<compile_context>
chip_gen: v6e
topology: v6e:2x2x1
jax: 0.10.0
libtpu: 0.0.40
codegen_flags: <defaults>
</compile_context>

<pallas_src>
import jax
import jax.numpy as jnp
from jax import lax
from jax.experimental import pallas as pl
from jax.experimental.pallas import tpu as pltpu

HID = 16  # linear1 out_features (fixed by the module)


def _round_up(x, m):
    return ((x + m - 1) // m) * m


def _cdiv(a, b):
    return -(-a // b)


def _disc_kernel(x_ref, w1_ref, b1_ref, w2_ref, b2_ref, o_ref):
    # x_ref : (BB, F)      one batch block, flattened features
    # w1_ref: (F, HID)     linear1 weight, matmul layout (resident)
    # b1_ref: (1, HID)
    # w2_ref: (1, HID)     linear2 weight, row form (resident)
    # b2_ref: (1, 1)
    # o_ref : (1, 1, BB)   lane-dense per-block output row
    h = jnp.dot(x_ref[...], w1_ref[...],
                preferred_element_type=jnp.float32) + b1_ref[...]
    h = jnp.maximum(h, 0.0)                                    # F.relu
    # linear2 in row form: (1, HID) @ (BB, HID)^T -> (1, BB) (MXU, rhs-transposed),
    # which makes the output naturally lane-dense (no relayout in the epilogue).
    z = lax.dot_general(
        w2_ref[...], h,
        dimension_numbers=(((1,), (1,)), ((), ())),
        preferred_element_type=jnp.float32) + b2_ref[...]
    o_ref[...] = z.reshape(o_ref.shape).astype(o_ref.dtype)


def _pick_block_rows(B, block_b):
    """Rows per grid step: multiple of 128, capped by block_b, and chosen so
    large batches keep >= ~4 grid steps (TensorCore sharding on v7x +
    pipeline overlap), while small batches collapse to a single block."""
    bb_cap = max(128, (block_b // 128) * 128)
    b128 = _round_up(B, 128)
    bb = _round_up(_cdiv(b128, 4), 128)       # aim for >= 4 grid steps
    return max(128, min(bb, bb_cap, b128))


def discriminator_forward(t, params, *, block_b=4096):
    """t: (B, T, D) float32 -> (B, 1) float32, matching the PyTorch module."""
    w1, b1, w2, b2 = params
    B, T, D = t.shape
    F = T * D
    assert w1.shape == (HID, F)
    assert b1.shape == (HID,)
    assert w2.shape == (1, HID)
    assert b2.shape == (1,)

    # ---- plain-JAX glue: flatten input, lay out weights ----
    x = t.reshape(B, F)                        # t.view(-1, T*D)
    BB = _pick_block_rows(B, block_b)

    # Only pad when the whole batch is smaller than one block; otherwise the
    # ragged tail is handled by a clipped partial last block (no extra HBM
    # copy, no extra traffic).
    rows = B
    if rows < BB:
        x = jnp.pad(x, ((0, BB - rows), (0, 0)))
        rows = BB
    num_blocks = _cdiv(rows, BB)

    w1t = jnp.transpose(w1)                    # (F, HID)
    b1r = b1.reshape(1, HID)
    w2r = w2.reshape(1, HID)
    b2r = b2.reshape(1, 1)

    itemsize = 4
    flops = 2 * B * (F * HID + HID)
    bytes_accessed = (B * F + num_blocks * BB + F * HID + 2 * HID + 1) * itemsize
    vmem_limit = int(min(
        48 * 1024 * 1024,
        max(16 * 1024 * 1024,
            2 * BB * F * itemsize            # double-buffered input block
            + 2 * 8 * BB * itemsize          # double-buffered (sublane-padded) output row
            + (F * HID + 4 * 128) * itemsize  # resident weights/biases
            + (2 << 20)),                     # headroom
    ))

    out = pl.pallas_call(
        _disc_kernel,
        out_shape=jax.ShapeDtypeStruct((num_blocks, 1, BB), jnp.float32),
        grid=(num_blocks,),
        in_specs=[
            pl.BlockSpec((BB, F), lambda i: (i, 0)),      # x (batch-blocked)
            pl.BlockSpec((F, HID), lambda i: (0, 0)),     # linear1 W (resident)
            pl.BlockSpec((1, HID), lambda i: (0, 0)),     # linear1 b
            pl.BlockSpec((1, HID), lambda i: (0, 0)),     # linear2 W (row)
            pl.BlockSpec((1, 1), lambda i: (0, 0)),       # linear2 b
        ],
        out_specs=pl.BlockSpec((1, 1, BB), lambda i: (i, 0, 0)),  # lane-dense row
        compiler_params=pltpu.CompilerParams(
            dimension_semantics=("parallel",),
            vmem_limit_bytes=vmem_limit),
        cost_estimate=pl.CostEstimate(
            flops=flops, transcendentals=0, bytes_accessed=bytes_accessed),
    )(x, w1t, b1r, w2r, b2r)

    # (num_blocks, 1, BB) is batch-row-major; strip pad/tail, back to (B, 1).
    return out.reshape(-1)[:B].reshape(B, 1)


def init_params(key, T, D):
    """Deterministic synthetic parameters with the PyTorch module's shapes."""
    F = T * D
    ks = jax.random.split(key, 4)
    w1 = 0.2 * jax.random.normal(ks[0], (HID, F), jnp.float32)
    b1 = 0.2 * jax.random.normal(ks[1], (HID,), jnp.float32)
    w2 = 0.2 * jax.random.normal(ks[2], (1, HID), jnp.float32)
    b2 = 0.2 * jax.random.normal(ks[3], (1,), jnp.float32)
    return w1, b1, w2, b2


def reference_forward(t, params):
    """Pure-JAX reference with exact PyTorch semantics."""
    w1, b1, w2, b2 = params
    B, T, D = t.shape
    h = t.reshape(B, T * D) @ w1.T + b1
    return jnp.maximum(h, 0.0) @ w2.T + b2


if __name__ == "__main__":
    key = jax.random.PRNGKey(0)
    k_t, k_p, k_t2, k_p2, k_t3 = jax.random.split(key, 5)

    # Small shapes consistent with the module: batch=2, T=8, D=16 (T*D = 128).
    B, T, D = 2, 8, 16
    params = init_params(k_p, T, D)
    t_small = jax.random.normal(k_t, (B, T, D), jnp.float32)

    out = jax.block_until_ready(discriminator_forward(t_small, params))
    ref = reference_forward(t_small, params)
    assert out.shape == (B, 1), out.shape
    assert jnp.allclose(out, ref, atol=1e-4, rtol=1e-4), (out, ref)

    # Larger, awkward batch: multi-step grid + clipped partial last block.
    B2 = 2050
    t_big = jax.random.normal(k_t2, (B2, T, D), jnp.float32)
    out2 = jax.block_until_ready(discriminator_forward(t_big, params))
    ref2 = reference_forward(t_big, params)
    assert out2.shape == (B2, 1), out2.shape
    assert jnp.allclose(out2, ref2, atol=1e-4, rtol=1e-4)

    # Module default D=1 (feature dim T*D = 8, well below one lane tile).
    B3, T3, D3 = 2, 8, 1
    params3 = init_params(k_p2, T3, D3)
    t_d1 = jax.random.normal(k_t3, (B3, T3, D3), jnp.float32)
    out3 = jax.block_until_ready(discriminator_forward(t_d1, params3))
    ref3 = reference_forward(t_d1, params3)
    assert out3.shape == (B3, 1), out3.shape
    assert jnp.allclose(out3, ref3, atol=1e-4, rtol=1e-4)

    print("KERNEL_OK")
</pallas_src>

<mosaic_0001>
module attributes {stable_mosaic.version = 11 : i64} {
  func.func @_disc_kernel(%arg0: i32, %arg1: memref<128x128xf32, #tpu.memory_space<vmem>>, %arg2: memref<128x16xf32, #tpu.memory_space<vmem>>, %arg3: memref<1x16xf32, #tpu.memory_space<vmem>>, %arg4: memref<1x16xf32, #tpu.memory_space<vmem>>, %arg5: memref<1x1xf32, #tpu.memory_space<vmem>>, %arg6: memref<1x1x128xf32, #tpu.memory_space<vmem>>) attributes {dimension_semantics = [#tpu.dimension_semantics<parallel>], iteration_bounds = array<i64: 1>, scalar_prefetch = 0 : i64, scratch_operands = 0 : i64, tpu.core_type = #tpu.core_type<tc>, window_params = [{transform_indices = @transform_0, window_bounds = array<i64: 128, 128>}, {pipeline_mode = #tpu.pipeline_mode<synchronous>, transform_indices = @transform_1, window_bounds = array<i64: 128, 16>}, {pipeline_mode = #tpu.pipeline_mode<synchronous>, transform_indices = @transform_2, window_bounds = array<i64: 1, 16>}, {pipeline_mode = #tpu.pipeline_mode<synchronous>, transform_indices = @transform_3, window_bounds = array<i64: 1, 16>}, {pipeline_mode = #tpu.pipeline_mode<synchronous>, transform_indices = @transform_4, window_bounds = array<i64: 1, 1>}, {transform_indices = @transform_5, window_bounds = array<i64: 1, 1, 128>}]} {
    %c0 = arith.constant 0 : index
    %c0_0 = arith.constant 0 : index
    %0 = vector.load %arg1[%c0, %c0_0] : memref<128x128xf32, #tpu.memory_space<vmem>>, vector<128x128xf32>
    %c0_1 = arith.constant 0 : index
    %c0_2 = arith.constant 0 : index
    %1 = vector.load %arg2[%c0_1, %c0_2] : memref<128x16xf32, #tpu.memory_space<vmem>>, vector<128x16xf32>
    %cst = arith.constant dense<0.000000e+00> : vector<128x16xf32>
    %2 = tpu.matmul %0, %1, %cst {dimension_numbers = #tpu.dot_dimension_numbers<[1], [0], [0], [1], [0, 0, 1, 1], [], []>} : vector<128x128xf32>, vector<128x16xf32>, vector<128x16xf32> -> vector<128x16xf32>
    %c0_3 = arith.constant 0 : index
    %c0_4 = arith.constant 0 : index
    %3 = vector.load %arg3[%c0_3, %c0_4] : memref<1x16xf32, #tpu.memory_space<vmem>>, vector<1x16xf32>
    %4 = vector.broadcast %3 : vector<1x16xf32> to vector<128x16xf32>
    %5 = arith.addf %2, %4 : vector<128x16xf32>
    %cst_5 = arith.constant 0.000000e+00 : f32
    %6 = vector.broadcast %cst_5 : f32 to vector<128x16xf32>
    %7 = arith.maximumf %5, %6 : vector<128x16xf32>
    %c0_6 = arith.constant 0 : index
    %c0_7 = arith.constant 0 : index
    %8 = vector.load %arg4[%c0_6, %c0_7] : memref<1x16xf32, #tpu.memory_space<vmem>>, vector<1x16xf32>
    %cst_8 = arith.constant dense<0.000000e+00> : vector<1x128xf32>
    %9 = tpu.matmul %8, %7, %cst_8 {dimension_numbers = #tpu.dot_dimension_numbers<[1], [1], [0], [0], [0, 0, 1, 0], [], []>} : vector<1x16xf32>, vector<128x16xf32>, vector<1x128xf32> -> vector<1x128xf32>
    %c0_9 = arith.constant 0 : index
    %c0_10 = arith.constant 0 : index
    %10 = vector.load %arg5[%c0_9, %c0_10] : memref<1x1xf32, #tpu.memory_space<vmem>>, vector<1x1xf32>
    %11 = vector.broadcast %10 : vector<1x1xf32> to vector<1x128xf32>
    %12 = arith.addf %9, %11 : vector<1x128xf32>
    %13 = vector.shape_cast %12 : vector<1x128xf32> to vector<1x1x128xf32>
    %c0_11 = arith.constant 0 : index
    %c0_12 = arith.constant 0 : index
    %c0_13 = arith.constant 0 : index
    %14 = vector.load %arg6[%c0_11, %c0_12, %c0_13] : memref<1x1x128xf32, #tpu.memory_space<vmem>>, vector<1x1x128xf32>
    tpu.vector_store %arg6[%c0_11, %c0_12, %c0_13], %13 {strides = array<i32>} : memref<1x1x128xf32, #tpu.memory_space<vmem>>, vector<1x1x128xf32>,
    return
  }
  func.func @transform_0(%arg0: i32) -> (i32, i32) {
    %c0_i32 = arith.constant 0 : i32
    %c0_i32_0 = arith.constant 0 : i32
    return %arg0, %c0_i32 : i32, i32
  }
  func.func @transform_1(%arg0: i32) -> (i32, i32) {
    %c0_i32 = arith.constant 0 : i32
    %c0_i32_0 = arith.constant 0 : i32
    %c0_i32_1 = arith.constant 0 : i32
    return %c0_i32, %c0_i32_0 : i32, i32
  }
  func.func @transform_2(%arg0: i32) -> (i32, i32) {
    %c0_i32 = arith.constant 0 : i32
    %c0_i32_0 = arith.constant 0 : i32
    %c0_i32_1 = arith.constant 0 : i32
    return %c0_i32, %c0_i32_0 : i32, i32
  }
  func.func @transform_3(%arg0: i32) -> (i32, i32) {
    %c0_i32 = arith.constant 0 : i32
    %c0_i32_0 = arith.constant 0 : i32
    %c0_i32_1 = arith.constant 0 : i32
    return %c0_i32, %c0_i32_0 : i32, i32
  }
  func.func @transform_4(%arg0: i32) -> (i32, i32) {
    %c0_i32 = arith.constant 0 : i32
    %c0_i32_0 = arith.constant 0 : i32
    %c0_i32_1 = arith.constant 0 : i32
    return %c0_i32, %c0_i32_0 : i32, i32
  }
  func.func @transform_5(%arg0: i32) -> (i32, i32, i32) {
    %c0_i32 = arith.constant 0 : i32
    %c0_i32_0 = arith.constant 0 : i32
    %c0_i32_1 = arith.constant 0 : i32
    return %arg0, %c0_i32, %c0_i32_0 : i32, i32, i32
  }
}

</mosaic_0001>

<llo_original>
// kernel: tpu_custom_call.1
$region0: #{tpu_custom_call.1}
  #allocation0 [shape = 'u32[]', space=smem, size = 0x4, offset = 0x4, fixed_abs, tag = 'smem constant byte address 0x4 - core index']
  #allocation1 [shape = 'u32[144,128]{1,0:T(1,128)}', space=vmem, size = 0x12000, scoped, tag = 'internal scratch']
  #allocation2 [shape = 'f32[1,1]{1,0:T(1,128)S(1)}', space=vmem, size = 0x200, scoped, tag = 'scoped memory for tpu_custom_call.1']
  %s0 = inlined_call_operand.vmem [shape: f32[128,128], index: 0, kind: input, shape index: {}]
  %s1 = inlined_call_operand.vmem [shape: f32[128,16], index: 1, kind: input, shape index: {}]
  %s2 = inlined_call_operand.vmem [shape: f32[1,16], index: 2, kind: input, shape index: {}]
  %s3 = inlined_call_operand.vmem [shape: f32[1,16], index: 3, kind: input, shape index: {}]
  %s4 = inlined_call_operand.<no memory space> [shape: f32[1,1], index: 4, kind: input, shape index: {}]
  %s5 = inlined_call_operand.hbm [shape: f32[1,1,128], index: 5, kind: output, shape index: {}]
  %s6 = sld [smem:[#allocation0]]
  $region30: #{tpu_custom_call.1} parent=0
    _
  %s8 = ssub.s32 1, %s6
  %s9 = scalar_select 0, %s8, %s6
  %v10 = vstv %s4
  %11 = vst [vmem:[#allocation2] sm:$0x1] %v10
  $region1: #{tpu_custom_call.1} parent=0
    #allocation3 [shape = 'u8[512]{0}', space=vmem, size = 0x400, scoped, tag = 'output window, operand 0, single buffered']
    #allocation4 [shape = 's32[1]{0}', space=sflag, size = 0x4, scoped, tag = 'scoped memory for tpu_custom_call.1']
    %12 = vsyncpa [#allocation4], 0
    // Predicated region
    $region2: #{tpu_custom_call.1} parent=1 // pred_check
      _
    $region3: #{tpu_custom_call.1} parent=1 // pred_check_branch
      %14 = sbr.rel (0) target = $region5
    $region4: #{tpu_custom_call.1} parent=1 // pred_region
      _
    $region5: #{tpu_custom_call.1} parent=1 // pred_fallthru
      _
    // Predicated region
    $region6: #{tpu_custom_call.1} parent=1 // pred_check
      _
    $region7: #{tpu_custom_call.1} parent=1 // pred_check_branch
      %16 = sbr.rel (0) target = $region9
    $region8: #{tpu_custom_call.1} parent=1 // pred_region
      _
    $region9: #{tpu_custom_call.1} parent=1 // pred_fallthru
      _
    // Predicated region
    $region10: #{tpu_custom_call.1} parent=1 // pred_check
      _
    $region11: #{tpu_custom_call.1} parent=1 // pred_check_branch
      %18 = sbr.rel (0) target = $region13
    $region12: #{tpu_custom_call.1} parent=1 // pred_region
      _
    $region13: #{tpu_custom_call.1} parent=1 // pred_fallthru
      _
    // Predicated region
    $region14: #{tpu_custom_call.1} parent=1 // pred_check
      _
    $region15: #{tpu_custom_call.1} parent=1 // pred_check_branch
      %20 = sbr.rel (0) target = $region17
    $region16: #{tpu_custom_call.1} parent=1 // pred_region
      _
    $region17: #{tpu_custom_call.1} parent=1 // pred_fallthru
      _
    // Predicated region
    $region18: #{tpu_custom_call.1} parent=1 // pred_check
      _
    $region19: #{tpu_custom_call.1} parent=1 // pred_check_branch
      %22 = sbr.rel (0) target = $region21
    $region20: #{tpu_custom_call.1} parent=1 // pred_region
      _
    $region21: #{tpu_custom_call.1} parent=1 // pred_fallthru
      _
    %v23 = vld [vmem:[%s0] sm:$0xff]
    %v24 = vld [vmem:[%s0 + $0x8] sm:$0xff]
    %v25 = vld [vmem:[%s0 + $0x10] sm:$0xff]
    %v26 = vld [vmem:[%s0 + $0x18] sm:$0xff]
    %v27 = vld [vmem:[%s0 + $0x20] sm:$0xff]
    %v28 = vld [vmem:[%s0 + $0x28] sm:$0xff]
    %v29 = vld [vmem:[%s0 + $0x30] sm:$0xff]
    %v30 = vld [vmem:[%s0 + $0x38] sm:$0xff]
    %v31 = vld [vmem:[%s0 + $0x40] sm:$0xff]
    %v32 = vld [vmem:[%s0 + $0x48] sm:$0xff]
    %v33 = vld [vmem:[%s0 + $0x50] sm:$0xff]
    %v34 = vld [vmem:[%s0 + $0x58] sm:$0xff]
    %v35 = vld [vmem:[%s0 + $0x60] sm:$0xff]
    %v36 = vld [vmem:[%s0 + $0x68] sm:$0xff]
    %v37 = vld [vmem:[%s0 + $0x70] sm:$0xff]
    %v38 = vld [vmem:[%s0 + $0x78] sm:$0xff]
    %v39 = vld [vmem:[%s1] sm:$0xff]
    %v40 = vld [vmem:[%s1 + $0x8] sm:$0xff]
    %v41 = vld [vmem:[%s1 + $0x10] sm:$0xff]
    %v42 = vld [vmem:[%s1 + $0x18] sm:$0xff]
    %v43 = vld [vmem:[%s1 + $0x20] sm:$0xff]
    %v44 = vld [vmem:[%s1 + $0x28] sm:$0xff]
    %v45 = vld [vmem:[%s1 + $0x30] sm:$0xff]
    %v46 = vld [vmem:[%s1 + $0x38] sm:$0xff]
    %v47 = vld [vmem:[%s1 + $0x40] sm:$0xff]
    %v48 = vld [vmem:[%s1 + $0x48] sm:$0xff]
    %v49 = vld [vmem:[%s1 + $0x50] sm:$0xff]
    %v50 = vld [vmem:[%s1 + $0x58] sm:$0xff]
    %v51 = vld [vmem:[%s1 + $0x60] sm:$0xff]
    %v52 = vld [vmem:[%s1 + $0x68] sm:$0xff]
    %v53 = vld [vmem:[%s1 + $0x70] sm:$0xff]
    %v54 = vld [vmem:[%s1 + $0x78] sm:$0xff]
    %v55 = vld [vmem:[%s2] sm:$0x1]
    %v57 = vlaneseq
    %v58 = vshrl.u32 %v57, 7
    %v59 = vsub.s32 0, %v58
    %v60 = vrot.slane %v55, %v59
    %62 = vmatprep.subr.mxu0 0.0
    %63 = vmatpush1.msra.mxu0 %v54
    %64 = vmatprep.subr.mxu0 0.0
    %65 = vmatpush1.msra.mxu0 %v53
    %66 = vmatprep.subr.mxu0 0.0
    %67 = vmatpush1.msra.mxu0 %v52
    %68 = vmatprep.subr.mxu0 0.0
    %69 = vmatpush1.msra.mxu0 %v51
    %70 = vmatprep.subr.mxu0 0.0
    %71 = vmatpush1.msra.mxu0 %v50
    %72 = vmatprep.subr.mxu0 0.0
    %73 = vmatpush1.msra.mxu0 %v49
    %74 = vmatprep.subr.mxu0 0.0
    %75 = vmatpush1.msra.mxu0 %v48
    %76 = vmatprep.subr.mxu0 0.0
    %77 = vmatpush1.msra.mxu0 %v47
    %78 = vmatprep.subr.mxu0 0.0
    %79 = vmatpush1.msra.mxu0 %v46
    %80 = vmatprep.subr.mxu0 0.0
    %81 = vmatpush1.msra.mxu0 %v45
    %82 = vmatprep.subr.mxu0 0.0
    %83 = vmatpush1.msra.mxu0 %v44
    %84 = vmatprep.subr.mxu0 0.0
    %85 = vmatpush1.msra.mxu0 %v43
    %86 = vmatprep.subr.mxu0 0.0
    %87 = vmatpush1.msra.mxu0 %v42
    %88 = vmatprep.subr.mxu0 0.0
    %89 = vmatpush1.msra.mxu0 %v41
    %90 = vmatprep.subr.mxu0 0.0
    %91 = vmatpush1.msra.mxu0 %v40
    %92 = vmatprep.subr.mxu0 0.0
    %93 = vmatpush1.msra.mxu0 %v39
    %94 = vmatprep.subr.mxu0 0.0
    %95 = vmatpush2.msra.mxu0 0.0
    %96 = vmatprep.subr.mxu0 0.0
    %97 = vmatpush2.msra.mxu0 0.0
    %98 = vmatprep.subr.mxu0 0.0
    %99 = vmatpush2.msra.mxu0 0.0
    %100 = vmatprep.subr.mxu0 0.0
    %101 = vmatpush2.msra.mxu0 0.0
    %102 = vmatprep.subr.mxu0 0.0
    %103 = vmatpush2.msra.mxu0 0.0
    %104 = vmatprep.subr.mxu0 0.0
    %105 = vmatpush2.msra.mxu0 0.0
    %106 = vmatprep.subr.mxu0 0.0
    %107 = vmatpush2.msra.mxu0 0.0
    %108 = vmatprep.subr.mxu0 0.0
    %109 = vmatpush2.msra.mxu0 0.0
    %110 = vmatprep.subr.mxu0 0.0
    %111 = vmatpush2.msra.mxu0 0.0
    %112 = vmatprep.subr.mxu0 0.0
    %113 = vmatpush2.msra.mxu0 0.0
    %114 = vmatprep.subr.mxu0 0.0
    %115 = vmatpush2.msra.mxu0 0.0
    %116 = vmatprep.subr.mxu0 0.0
    %117 = vmatpush2.msra.mxu0 0.0
    %118 = vmatprep.subr.mxu0 0.0
    %119 = vmatpush2.msra.mxu0 0.0
    %120 = vmatprep.subr.mxu0 0.0
    %121 = vmatpush2.msra.mxu0 0.0
    %122 = vmatprep.subr.mxu0 0.0
    %123 = vmatpush2.msra.mxu0 0.0
    %124 = vmatprep.subr.mxu0 0.0
    %125 = vmatpush2.msra.mxu0 0.0
    %126 = vmatprep.mubr.f32.mxu0 0.0
    %127 = vmatmul.mubr.f32.gmra.mxu0 %v23
    %v128 = vpop.f32.mrf.mxu0
    %v129 = vadd.f32 %v60, %v128
    %v130 = vpop.f32.mrf.mxu0
    %131 = vmatprep.mubr.f32.mxu0 0.0
    %132 = vmatmul.mubr.f32.gmra.mxu0 %v24
    %v133 = vpop.f32.mrf.mxu0
    %v134 = vadd.f32 %v60, %v133
    %v135 = vpop.f32.mrf.mxu0
    %136 = vmatprep.mubr.f32.mxu0 0.0
    %137 = vmatmul.mubr.f32.gmra.mxu0 %v25
    %v138 = vpop.f32.mrf.mxu0
    %v139 = vadd.f32 %v60, %v138
    %v140 = vpop.f32.mrf.mxu0
    %141 = vmatprep.mubr.f32.mxu0 0.0
    %142 = vmatmul.mubr.f32.gmra.mxu0 %v26
    %v143 = vpop.f32.mrf.mxu0
    %v144 = vadd.f32 %v60, %v143
    %v145 = vpop.f32.mrf.mxu0
    %146 = vmatprep.mubr.f32.mxu0 0.0
    %147 = vmatmul.mubr.f32.gmra.mxu0 %v27
    %v148 = vpop.f32.mrf.mxu0
    %v149 = vadd.f32 %v60, %v148
    %v150 = vpop.f32.mrf.mxu0
    %151 = vmatprep.mubr.f32.mxu0 0.0
    %152 = vmatmul.mubr.f32.gmra.mxu0 %v28
    %v153 = vpop.f32.mrf.mxu0
    %v154 = vadd.f32 %v60, %v153
    %v155 = vpop.f32.mrf.mxu0
    %156 = vmatprep.mubr.f32.mxu0 0.0
    %157 = vmatmul.mubr.f32.gmra.mxu0 %v29
    %v158 = vpop.f32.mrf.mxu0
    %v159 = vadd.f32 %v60, %v158
    %v160 = vpop.f32.mrf.mxu0
    %161 = vmatprep.mubr.f32.mxu0 0.0
    %162 = vmatmul.mubr.f32.gmra.mxu0 %v30
    %v163 = vpop.f32.mrf.mxu0
    %v164 = vadd.f32 %v60, %v163
    %v165 = vpop.f32.mrf.mxu0
    %166 = vmatprep.mubr.f32.mxu0 0.0
    %167 = vmatmul.mubr.f32.gmra.mxu0 %v31
    %v168 = vpop.f32.mrf.mxu0
    %v169 = vadd.f32 %v60, %v168
    %v170 = vpop.f32.mrf.mxu0
    %171 = vmatprep.mubr.f32.mxu0 0.0
    %172 = vmatmul.mubr.f32.gmra.mxu0 %v32
    %v173 = vpop.f32.mrf.mxu0
    %v174 = vadd.f32 %v60, %v173
    %v175 = vpop.f32.mrf.mxu0
    %176 = vmatprep.mubr.f32.mxu0 0.0
    %177 = vmatmul.mubr.f32.gmra.mxu0 %v33
    %v178 = vpop.f32.mrf.mxu0
    %v179 = vadd.f32 %v60, %v178
    %v180 = vpop.f32.mrf.mxu0
    %181 = vmatprep.mubr.f32.mxu0 0.0
    %182 = vmatmul.mubr.f32.gmra.mxu0 %v34
    %v183 = vpop.f32.mrf.mxu0
    %v184 = vadd.f32 %v60, %v183
    %v185 = vpop.f32.mrf.mxu0
    %186 = vmatprep.mubr.f32.mxu0 0.0
    %187 = vmatmul.mubr.f32.gmra.mxu0 %v35
    %v188 = vpop.f32.mrf.mxu0
    %v189 = vadd.f32 %v60, %v188
    %v190 = vpop.f32.mrf.mxu0
    %191 = vmatprep.mubr.f32.mxu0 0.0
    %192 = vmatmul.mubr.f32.gmra.mxu0 %v36
    %v193 = vpop.f32.mrf.mxu0
    %v194 = vadd.f32 %v60, %v193
    %v195 = vpop.f32.mrf.mxu0
    %196 = vmatprep.mubr.f32.mxu0 0.0
    %197 = vmatmul.mubr.f32.gmra.mxu0 %v37
    %v198 = vpop.f32.mrf.mxu0
    %v199 = vadd.f32 %v60, %v198
    %v200 = vpop.f32.mrf.mxu0
    %201 = vmatprep.mubr.f32.mxu0 0.0
    %202 = vmatmul.mubr.f32.gmra.mxu0 %v38
    %v203 = vpop.f32.mrf.mxu0
    %v204 = vadd.f32 %v60, %v203
    %v205 = vpop.f32.mrf.mxu0
    %206 = vdwg.mxu0
    %v207 = vmax.f32 %v129, 0.0
    %v208 = vmax.f32 %v134, 0.0
    %v209 = vmax.f32 %v139, 0.0
    %v210 = vmax.f32 %v144, 0.0
    %v211 = vmax.f32 %v149, 0.0
    %v212 = vmax.f32 %v154, 0.0
    %v213 = vmax.f32 %v159, 0.0
    %v214 = vmax.f32 %v164, 0.0
    %v215 = vmax.f32 %v169, 0.0
    %v216 = vmax.f32 %v174, 0.0
    %v217 = vmax.f32 %v179, 0.0
    %v218 = vmax.f32 %v184, 0.0
    %v219 = vmax.f32 %v189, 0.0
    %v220 = vmax.f32 %v194, 0.0
    %v221 = vmax.f32 %v199, 0.0
    %v222 = vmax.f32 %v204, 0.0
    %v223 = vld [vmem:[%s3] sm:$0x1]
    %v224 = vld [vmem:[#allocation2] sm:$0x1]
    %226 = vset.pattern.permute.xlu0 0
    %227 = vperm.xlu0 %226, %v224
    %v228 = vpop.permute.xlu0 %227
    %v230 = vlaneseq
    %v231 = vshrl.u32 %v230, 7
    %v232 = vsub.s32 0, %v231
    %v233 = vrot.slane %v228, %v232
    %vm234 = vcmask 130048
    %v236 = vsel %vm234, %v223, 0
    %v239 = vsel %vm234, %v207, 0
    %v242 = vsel %vm234, %v208, 0
    %v245 = vsel %vm234, %v209, 0
    %v248 = vsel %vm234, %v210, 0
    %v251 = vsel %vm234, %v211, 0
    %v254 = vsel %vm234, %v212, 0
    %v257 = vsel %vm234, %v213, 0
    %v260 = vsel %vm234, %v214, 0
    %v263 = vsel %vm234, %v215, 0
    %v266 = vsel %vm234, %v216, 0
    %v269 = vsel %vm234, %v217, 0
    %v272 = vsel %vm234, %v218, 0
    %v275 = vsel %vm234, %v219, 0
    %v278 = vsel %vm234, %v220, 0
    %v281 = vsel %vm234, %v221, 0
    %v284 = vsel %vm234, %v222, 0
    %286 = vmatprep.subr.mxu0 0.0
    %287 = vmatpush1.xpose.msra.mxu0 %v284
    %288 = vmatprep.subr.mxu0 0.0
    %289 = vmatpush1.xpose.msra.mxu0 %v281
    %290 = vmatprep.subr.mxu0 0.0
    %291 = vmatpush1.xpose.msra.mxu0 %v278
    %292 = vmatprep.subr.mxu0 0.0
    %293 = vmatpush1.xpose.msra.mxu0 %v275
    %294 = vmatprep.subr.mxu0 0.0
    %295 = vmatpush1.xpose.msra.mxu0 %v272
    %296 = vmatprep.subr.mxu0 0.0
    %297 = vmatpush1.xpose.msra.mxu0 %v269
    %298 = vmatprep.subr.mxu0 0.0
    %299 = vmatpush1.xpose.msra.mxu0 %v266
    %300 = vmatprep.subr.mxu0 0.0
    %301 = vmatpush1.xpose.msra.mxu0 %v263
    %302 = vmatprep.subr.mxu0 0.0
    %303 = vmatpush1.xpose.msra.mxu0 %v260
    %304 = vmatprep.subr.mxu0 0.0
    %305 = vmatpush1.xpose.msra.mxu0 %v257
    %306 = vmatprep.subr.mxu0 0.0
    %307 = vmatpush1.xpose.msra.mxu0 %v254
    %308 = vmatprep.subr.mxu0 0.0
    %309 = vmatpush1.xpose.msra.mxu0 %v251
    %310 = vmatprep.subr.mxu0 0.0
    %311 = vmatpush1.xpose.msra.mxu0 %v248
    %312 = vmatprep.subr.mxu0 0.0
    %313 = vmatpush1.xpose.msra.mxu0 %v245
    %314 = vmatprep.subr.mxu0 0.0
    %315 = vmatpush1.xpose.msra.mxu0 %v242
    %316 = vmatprep.subr.mxu0 0.0
    %317 = vmatpush1.xpose.msra.mxu0 %v239
    %318 = vmatprep.subr.mxu0 0.0
    %319 = vmatpush2.xpose.msra.mxu0 0.0
    %320 = vmatprep.subr.mxu0 0.0
    %321 = vmatpush2.xpose.msra.mxu0 0.0
    %322 = vmatprep.subr.mxu0 0.0
    %323 = vmatpush2.xpose.msra.mxu0 0.0
    %324 = vmatprep.subr.mxu0 0.0
    %325 = vmatpush2.xpose.msra.mxu0 0.0
    %326 = vmatprep.subr.mxu0 0.0
    %327 = vmatpush2.xpose.msra.mxu0 0.0
    %328 = vmatprep.subr.mxu0 0.0
    %329 = vmatpush2.xpose.msra.mxu0 0.0
    %330 = vmatprep.subr.mxu0 0.0
    %331 = vmatpush2.xpose.msra.mxu0 0.0
    %332 = vmatprep.subr.mxu0 0.0
    %333 = vmatpush2.xpose.msra.mxu0 0.0
    %334 = vmatprep.subr.mxu0 0.0
    %335 = vmatpush2.xpose.msra.mxu0 0.0
    %336 = vmatprep.subr.mxu0 0.0
    %337 = vmatpush2.xpose.msra.mxu0 0.0
    %338 = vmatprep.subr.mxu0 0.0
    %339 = vmatpush2.xpose.msra.mxu0 0.0
    %340 = vmatprep.subr.mxu0 0.0
    %341 = vmatpush2.xpose.msra.mxu0 0.0
    %342 = vmatprep.subr.mxu0 0.0
    %343 = vmatpush2.xpose.msra.mxu0 0.0
    %344 = vmatprep.subr.mxu0 0.0
    %345 = vmatpush2.xpose.msra.mxu0 0.0
    %346 = vmatprep.subr.mxu0 0.0
    %347 = vmatpush2.xpose.msra.mxu0 0.0
    %348 = vmatprep.subr.mxu0 0.0
    %349 = vmatpush2.xpose.msra.mxu0 0.0
    %350 = vmatprep.mubr.f32.mxu0 0.0
    %351 = vmatmul.mubr.f32.gmra.mxu0 %v236
    %v352 = vpop.f32.mrf.mxu0
    %v353 = vadd.f32 %v233, %v352
    %v354 = vpop.f32.mrf.mxu0
    %355 = vdwg.mxu0
    %356 = vst [vmem:[#allocation3] sm:$0x1] %v353
    // Predicated region
    $region22: #{tpu_custom_call.1} parent=1 // pred_check
      _
    $region23: #{tpu_custom_call.1} parent=1 // pred_check_branch
      %358 = sbr.rel (0) target = $region25
    $region24: #{tpu_custom_call.1} parent=1 // pred_region
      %s360 = ssub.s32 16, 16
      %361 = vsyncadd [#allocation4], %s360
      %s363 = sshll.u32 [#allocation3], 4
      %s364 = int_to_ptr.vmem [resolvable:$true] %s363
      %366 = dma.vmem_to_hbm [thread:$0]  %s364, 16, %s5, [#allocation4]
    $region25: #{tpu_custom_call.1} parent=1 // pred_fallthru
      _
    // Predicated region
    $region26: #{tpu_custom_call.1} parent=1 // pred_check
      _
    $region27: #{tpu_custom_call.1} parent=1 // pred_check_branch
      %368 = sbr.rel (0) target = $region29
    $region28: #{tpu_custom_call.1} parent=1 // pred_region
      %369 = dma.done [#allocation4], 16
    $region29: #{tpu_custom_call.1} parent=1 // pred_fallthru
      _
    %370 = vsyncpa [#allocation4], 1

</llo_original>
